<compile_context>
chip_gen: v6e
topology: v6e:2x2x1
jax: 0.10.0
libtpu: 0.0.40
codegen_flags: <defaults>
</compile_context>

<pallas_src>
import jax
import jax.numpy as jnp
from jax.experimental import pallas as pl
from jax.experimental.pallas import tpu as pltpu


def _round_up(n, m):
    return ((n + m - 1) // m) * m


# ---------------------------------------------------------------------------
# Kernels
# ---------------------------------------------------------------------------
def _embed_kernel_resident(x_ref, w_ref, b_ref, o_ref):
    """Whole-K matmul with the weight VMEM-resident; fused bias + L2 norm."""
    w = w_ref[...]                                  # (din_p, dout_p) bf16, resident
    x = x_ref[...].astype(w.dtype)                  # f32 -> bf16 cast in-kernel (VPU,
                                                    # hidden under the MXU)
    y = jnp.dot(x, w, preferred_element_type=jnp.float32) + b_ref[...]
    # Normalize(power=2): y * rsqrt(sum(y^2)); eps avoids div-by-zero.
    inv = jax.lax.rsqrt(jnp.sum(y * y, axis=1, keepdims=True) + 1e-12)
    o_ref[...] = (y * inv).astype(o_ref.dtype)


def _embed_kernel_ktiled(x_ref, w_ref, b_ref, o_ref, acc_ref):
    """K-tiled matmul (weight streamed in (tk, dout_p) tiles) with f32 acc."""
    k = pl.program_id(1)

    @pl.when(k == 0)
    def _():
        acc_ref[...] = jnp.zeros_like(acc_ref)

    w = w_ref[...]
    x = x_ref[...].astype(w.dtype)
    acc_ref[...] += jnp.dot(x, w, preferred_element_type=jnp.float32)

    @pl.when(k == pl.num_programs(1) - 1)
    def _():
        y = acc_ref[...] + b_ref[...]
        inv = jax.lax.rsqrt(jnp.sum(y * y, axis=1, keepdims=True) + 1e-12)
        o_ref[...] = (y * inv).astype(o_ref.dtype)


# ---------------------------------------------------------------------------
# One-time parameter prep (NOT on the per-call path)
# ---------------------------------------------------------------------------
def prepare_embed_params(weight, bias, *, compute_dtype=jnp.bfloat16):
    """Transpose, cast, and lane-pad the nn.Linear params once at init.

    weight: (dim_out, dim_in) as stored by nn.Linear; bias: (dim_out,).
    Returns (w_t, b2d, dim_in, dim_out):
      w_t : (din_p, dout_p) compute_dtype, zero-padded to multiples of 128
      b2d : (1, dout_p) float32, zero-padded
    Zero padding is exact for both the matmul and the L2 norm.
    """
    dim_out, dim_in = weight.shape
    din_p = _round_up(dim_in, 128)
    dout_p = _round_up(dim_out, 128)
    w_t = jnp.asarray(weight).T.astype(compute_dtype)       # (dim_in, dim_out)
    if (din_p, dout_p) != (dim_in, dim_out):
        w_t = jnp.pad(w_t, ((0, din_p - dim_in), (0, dout_p - dim_out)))
    b2d = jnp.asarray(bias).astype(jnp.float32).reshape(1, dim_out)
    if dout_p != dim_out:
        b2d = jnp.pad(b2d, ((0, 0), (0, dout_p - dim_out)))
    return w_t, b2d, dim_in, dim_out


def _pick_tk(din_p, dout_p, w_itemsize, budget_bytes):
    """Largest multiple of 128 dividing din_p whose weight tile fits the budget."""
    best = 128
    tk = 128
    while tk <= din_p:
        if din_p % tk == 0 and tk * dout_p * w_itemsize <= budget_bytes:
            best = tk
        tk += 128
    return best


# ---------------------------------------------------------------------------
# Forward wrapper
# ---------------------------------------------------------------------------
def embed_forward(x, w_t, b2d, dim_in, dim_out, *,
                  out_dtype=None,
                  resident_weight_limit_bytes=16 << 20,
                  k_tile_budget_bytes=4 << 20):
    """Fused  out = l2norm(x.reshape(B, -1) @ W^T + b)  on TPU.

    x   : (B, C, H, W) (flattened row-major like torch .view(B, -1))
    w_t : (din_p, dout_p) pre-transposed, pre-padded compute-dtype weight
    b2d : (1, dout_p) pre-padded f32 bias
    """
    B = x.shape[0]
    din_p, dout_p = w_t.shape
    if out_dtype is None:
        out_dtype = x.dtype       # pass out_dtype=jnp.bfloat16 to halve writeback

    x2d = x.reshape(B, -1)        # no wrapper cast: bf16 cast happens in-kernel
    assert x2d.shape[1] == dim_in
    if din_p != dim_in:
        x2d = jnp.pad(x2d, ((0, 0), (0, din_p - dim_in)))

    # Batch tile selection (see header).
    tb = 256 if B >= 512 else 128
    tb = min(tb, _round_up(B, 16))
    while tb > 16 and pl.cdiv(B, tb) < 2:
        tb = max(16, _round_up(tb // 2, 16))
    Bp = _round_up(B, tb)
    if Bp != B:
        x2d = jnp.pad(x2d, ((0, Bp - B), (0, 0)))

    x_itemsize = x2d.dtype.itemsize
    w_itemsize = w_t.dtype.itemsize
    o_itemsize = jnp.dtype(out_dtype).itemsize
    w_bytes = din_p * dout_p * w_itemsize
    resident = w_bytes <= resident_weight_limit_bytes

    if resident:
        grid = (Bp // tb,)
        dims = ("parallel",)
        tk = None
        vmem_needed = (2 * tb * din_p * x_itemsize        # x tile, double-buffered
                       + 2 * w_bytes                      # weight (worst case 2x)
                       + 2 * dout_p * 4                   # bias
                       + 2 * tb * dout_p * o_itemsize     # out tile
                       + 3 * tb * dout_p * 4)             # f32 intermediates
        bytes_accessed = (Bp * din_p * x_itemsize + w_bytes + dout_p * 4
                          + Bp * dout_p * o_itemsize)
    else:
        tk = _pick_tk(din_p, dout_p, w_itemsize, k_tile_budget_bytes)
        grid = (Bp // tb, din_p // tk)
        dims = ("parallel", "arbitrary")
        vmem_needed = (2 * tb * tk * x_itemsize
                       + 2 * tk * dout_p * w_itemsize
                       + 2 * dout_p * 4
                       + 2 * tb * dout_p * o_itemsize
                       + tb * dout_p * 4                  # accumulator scratch
                       + 3 * tb * dout_p * 4)
        bytes_accessed = (Bp * din_p * x_itemsize
                          + (Bp // tb) * w_bytes          # weight re-streamed per row tile
                          + dout_p * 4 + Bp * dout_p * o_itemsize)

    # Explicit scoped-VMEM limit sized to the real footprint; capped at 48 MiB
    # so it stays under v7x's 64 MiB/TC while still far above the defaults.
    vmem_limit = int(min(max(2 * vmem_needed, 32 << 20), 48 << 20))

    cost = pl.CostEstimate(flops=2 * Bp * din_p * dout_p,
                           transcendentals=Bp,
                           bytes_accessed=int(bytes_accessed))

    def call(single_buffer_invariant):
        def inv_spec(shape, index_map):
            # Grid-invariant blocks: fetched from HBM once, kept resident;
            # single-buffer them so they don't pay 2x VMEM.
            if single_buffer_invariant:
                return pl.BlockSpec(shape, index_map, pipeline_mode=pl.Buffered(1))
            return pl.BlockSpec(shape, index_map)

        if resident:
            kernel = _embed_kernel_resident
            in_specs = [
                pl.BlockSpec((tb, din_p), lambda i: (i, 0)),
                inv_spec((din_p, dout_p), lambda i: (0, 0)),
                inv_spec((1, dout_p), lambda i: (0, 0)),
            ]
            out_spec = pl.BlockSpec((tb, dout_p), lambda i: (i, 0))
            scratch = []
        else:
            kernel = _embed_kernel_ktiled
            in_specs = [
                pl.BlockSpec((tb, tk), lambda i, k: (i, k)),
                pl.BlockSpec((tk, dout_p), lambda i, k: (k, 0)),
                inv_spec((1, dout_p), lambda i, k: (0, 0)),
            ]
            out_spec = pl.BlockSpec((tb, dout_p), lambda i, k: (i, 0))
            scratch = [pltpu.VMEM((tb, dout_p), jnp.float32)]

        return pl.pallas_call(
            kernel,
            out_shape=jax.ShapeDtypeStruct((Bp, dout_p), out_dtype),
            grid_spec=pltpu.PrefetchScalarGridSpec(
                num_scalar_prefetch=0,
                grid=grid,
                in_specs=in_specs,
                out_specs=out_spec,
                scratch_shapes=scratch,
            ),
            compiler_params=pltpu.CompilerParams(
                dimension_semantics=dims,
                vmem_limit_bytes=vmem_limit,
            ),
            cost_estimate=cost,
        )(x2d, w_t, b2d)

    try:
        out = call(single_buffer_invariant=True)
    except Exception:
        # Fallback for jax versions that reject Buffered(1) on invariant blocks.
        out = call(single_buffer_invariant=False)

    if Bp != B or dout_p != dim_out:
        out = out[:B, :dim_out]
    return out


# ---------------------------------------------------------------------------
# Reference + test
# ---------------------------------------------------------------------------
def embed_reference(x, weight, bias):
    x2d = x.reshape(x.shape[0], -1).astype(jnp.float32)
    y = x2d @ weight.T.astype(jnp.float32) + bias.astype(jnp.float32)
    norm = jnp.sqrt(jnp.sum(y * y, axis=1, keepdims=True))
    return y / norm


if __name__ == "__main__":
    key = jax.random.PRNGKey(0)
    k_x, k_w, k_b = jax.random.split(key, 3)

    # Small shapes: B=8, C=4, H=W=8 -> dim_in = 256, dim_out = 128
    B, C, H, W = 8, 4, 8, 8
    dim_in = C * H * W
    dim_out = 128

    x = jax.random.normal(k_x, (B, C, H, W), dtype=jnp.float32)

    # Deterministic init mimicking nn.Linear default: U(-1/sqrt(dim_in), ...)
    bound = 1.0 / (dim_in ** 0.5)
    weight = jax.random.uniform(k_w, (dim_out, dim_in), dtype=jnp.float32,
                                minval=-bound, maxval=bound)
    bias = jax.random.uniform(k_b, (dim_out,), dtype=jnp.float32,
                              minval=-bound, maxval=bound)

    # One-time prep (transpose + bf16 cast + lane padding) — NOT per call.
    w_t, b2d, din, dout = prepare_embed_params(weight, bias)

    ref = embed_reference(x, weight, bias)

    # 1) Resident-weight path.
    out = jax.block_until_ready(embed_forward(x, w_t, b2d, din, dout))
    assert out.shape == (B, dim_out)
    # bf16 matmul inputs with f32 accumulation: deliberate precision trade.
    assert jnp.allclose(out, ref, atol=1e-2, rtol=1e-2), \
        float(jnp.max(jnp.abs(out - ref)))
    assert jnp.allclose(jnp.sum(out.astype(jnp.float32) ** 2, axis=1),
                        jnp.ones((B,)), atol=1e-3)

    # 2) K-tiled path (forced small thresholds so the large-weight fallback
    #    that v7x needs is exercised and verified too).
    out_kt = jax.block_until_ready(
        embed_forward(x, w_t, b2d, din, dout,
                      resident_weight_limit_bytes=0,
                      k_tile_budget_bytes=128 * 128 * 2))
    assert out_kt.shape == (B, dim_out)
    assert jnp.allclose(out_kt, ref, atol=1e-2, rtol=1e-2), \
        float(jnp.max(jnp.abs(out_kt - ref)))

    print("KERNEL_OK")
</pallas_src>

<mosaic_0001>
module attributes {stable_mosaic.version = 11 : i64} {
  func.func @_embed_kernel_resident(%arg0: i32, %arg1: memref<16x256xf32, #tpu.memory_space<vmem>>, %arg2: memref<256x128xbf16, #tpu.memory_space<vmem>>, %arg3: memref<1x128xf32, #tpu.memory_space<vmem>>, %arg4: memref<16x128xf32, #tpu.memory_space<vmem>>) attributes {dimension_semantics = [#tpu.dimension_semantics<parallel>], iteration_bounds = array<i64: 1>, scalar_prefetch = 0 : i64, scratch_operands = 0 : i64, tpu.core_type = #tpu.core_type<tc>, window_params = [{transform_indices = @transform_0, window_bounds = array<i64: 16, 256>}, {pipeline_mode = #tpu.pipeline_mode<synchronous>, transform_indices = @transform_1, window_bounds = array<i64: 256, 128>}, {pipeline_mode = #tpu.pipeline_mode<synchronous>, transform_indices = @transform_2, window_bounds = array<i64: 1, 128>}, {transform_indices = @transform_3, window_bounds = array<i64: 16, 128>}]} {
    %c0 = arith.constant 0 : index
    %c0_0 = arith.constant 0 : index
    %0 = vector.load %arg2[%c0, %c0_0] : memref<256x128xbf16, #tpu.memory_space<vmem>>, vector<256x128xbf16>
    %c0_1 = arith.constant 0 : index
    %c0_2 = arith.constant 0 : index
    %1 = vector.load %arg1[%c0_1, %c0_2] : memref<16x256xf32, #tpu.memory_space<vmem>>, vector<16x256xf32>
    %2 = arith.truncf %1 : vector<16x256xf32> to vector<16x256xbf16>
    %cst = arith.constant dense<0.000000e+00> : vector<16x128xf32>
    %3 = tpu.matmul %2, %0, %cst {dimension_numbers = #tpu.dot_dimension_numbers<[1], [0], [0], [1], [0, 0, 1, 1], [], []>} : vector<16x256xbf16>, vector<256x128xbf16>, vector<16x128xf32> -> vector<16x128xf32>
    %c0_3 = arith.constant 0 : index
    %c0_4 = arith.constant 0 : index
    %4 = vector.load %arg3[%c0_3, %c0_4] : memref<1x128xf32, #tpu.memory_space<vmem>>, vector<1x128xf32>
    %5 = vector.broadcast %4 : vector<1x128xf32> to vector<16x128xf32>
    %6 = arith.addf %3, %5 : vector<16x128xf32>
    %7 = arith.mulf %6, %6 : vector<16x128xf32>
    %cst_5 = arith.constant dense<0.000000e+00> : vector<16xf32>
    %8 = vector.multi_reduction <add>, %7, %cst_5 [1] : vector<16x128xf32> to vector<16xf32>
    %9 = vector.shape_cast %8 : vector<16xf32> to vector<16x1xf32>
    %cst_6 = arith.constant 9.99999996E-13 : f32
    %10 = vector.broadcast %cst_6 : f32 to vector<16x1xf32>
    %11 = arith.addf %9, %10 : vector<16x1xf32>
    %12 = math.rsqrt %11 : vector<16x1xf32>
    %13 = vector.broadcast %12 : vector<16x1xf32> to vector<16x128xf32>
    %14 = arith.mulf %6, %13 : vector<16x128xf32>
    %c0_7 = arith.constant 0 : index
    %c0_8 = arith.constant 0 : index
    %15 = vector.load %arg4[%c0_7, %c0_8] : memref<16x128xf32, #tpu.memory_space<vmem>>, vector<16x128xf32>
    tpu.vector_store %arg4[%c0_7, %c0_8], %14 {strides = array<i32>} : memref<16x128xf32, #tpu.memory_space<vmem>>, vector<16x128xf32>,
    return
  }
  func.func @transform_0(%arg0: i32) -> (i32, i32) {
    %c0_i32 = arith.constant 0 : i32
    %c0_i32_0 = arith.constant 0 : i32
    return %arg0, %c0_i32 : i32, i32
  }
  func.func @transform_1(%arg0: i32) -> (i32, i32) {
    %c0_i32 = arith.constant 0 : i32
    %c0_i32_0 = arith.constant 0 : i32
    %c0_i32_1 = arith.constant 0 : i32
    return %c0_i32, %c0_i32_0 : i32, i32
  }
  func.func @transform_2(%arg0: i32) -> (i32, i32) {
    %c0_i32 = arith.constant 0 : i32
    %c0_i32_0 = arith.constant 0 : i32
    %c0_i32_1 = arith.constant 0 : i32
    return %c0_i32, %c0_i32_0 : i32, i32
  }
  func.func @transform_3(%arg0: i32) -> (i32, i32) {
    %c0_i32 = arith.constant 0 : i32
    %c0_i32_0 = arith.constant 0 : i32
    return %arg0, %c0_i32 : i32, i32
  }
}

module attributes {stable_mosaic.version = 11 : i64} {
  func.func @_embed_kernel_resident(%arg0: i32, %arg1: memref<16x256xf32, #tpu.memory_space<vmem>>, %arg2: memref<256x128xbf16, #tpu.memory_space<vmem>>, %arg3: memref<1x128xf32, #tpu.memory_space<vmem>>, %arg4: memref<16x128xf32, #tpu.memory_space<vmem>>) attributes {dimension_semantics = [#tpu.dimension_semantics<parallel>], iteration_bounds = array<i64: 1>, scalar_prefetch = 0 : i64, scratch_operands = 0 : i64, tpu.core_type = #tpu.core_type<tc>, window_params = [{transform_indices = @transform_0, window_bounds = array<i64: 16, 256>}, {pipeline_mode = #tpu.pipeline_mode<synchronous>, transform_indices = @transform_1, window_bounds = array<i64: 256, 128>}, {pipeline_mode = #tpu.pipeline_mode<synchronous>, transform_indices = @transform_2, window_bounds = array<i64: 1, 128>}, {transform_indices = @transform_3, window_bounds = array<i64: 16, 128>}]} {
    %c0 = arith.constant 0 : index
    %c0_0 = arith.constant 0 : index
    %0 = vector.load %arg2[%c0, %c0_0] : memref<256x128xbf16, #tpu.memory_space<vmem>>, vector<256x128xbf16>
    %c0_1 = arith.constant 0 : index
    %c0_2 = arith.constant 0 : index
    %1 = vector.load %arg1[%c0_1, %c0_2] : memref<16x256xf32, #tpu.memory_space<vmem>>, vector<16x256xf32>
    %2 = arith.truncf %1 : vector<16x256xf32> to vector<16x256xbf16>
    %cst = arith.constant dense<0.000000e+00> : vector<16x128xf32>
    %3 = tpu.matmul %2, %0, %cst {dimension_numbers = #tpu.dot_dimension_numbers<[1], [0], [0], [1], [0, 0, 1, 1], [], []>} : vector<16x256xbf16>, vector<256x128xbf16>, vector<16x128xf32> -> vector<16x128xf32>
    %c0_3 = arith.constant 0 : index
    %c0_4 = arith.constant 0 : index
    %4 = vector.load %arg3[%c0_3, %c0_4] : memref<1x128xf32, #tpu.memory_space<vmem>>, vector<1x128xf32>
    %5 = vector.broadcast %4 : vector<1x128xf32> to vector<16x128xf32>
    %6 = arith.addf %3, %5 : vector<16x128xf32>
    %7 = arith.mulf %6, %6 : vector<16x128xf32>
    %cst_5 = arith.constant dense<0.000000e+00> : vector<16xf32>
    %8 = vector.multi_reduction <add>, %7, %cst_5 [1] : vector<16x128xf32> to vector<16xf32>
    %9 = vector.shape_cast %8 : vector<16xf32> to vector<16x1xf32>
    %cst_6 = arith.constant 9.99999996E-13 : f32
    %10 = vector.broadcast %cst_6 : f32 to vector<16x1xf32>
    %11 = arith.addf %9, %10 : vector<16x1xf32>
    %12 = math.rsqrt %11 : vector<16x1xf32>
    %13 = vector.broadcast %12 : vector<16x1xf32> to vector<16x128xf32>
    %14 = arith.mulf %6, %13 : vector<16x128xf32>
    %c0_7 = arith.constant 0 : index
    %c0_8 = arith.constant 0 : index
    %15 = vector.load %arg4[%c0_7, %c0_8] : memref<16x128xf32, #tpu.memory_space<vmem>>, vector<16x128xf32>
    tpu.vector_store %arg4[%c0_7, %c0_8], %14 {strides = array<i32>} : memref<16x128xf32, #tpu.memory_space<vmem>>, vector<16x128xf32>,
    return
  }
  func.func @transform_0(%arg0: i32) -> (i32, i32) {
    %c0_i32 = arith.constant 0 : i32
    %c0_i32_0 = arith.constant 0 : i32
    return %arg0, %c0_i32 : i32, i32
  }
  func.func @transform_1(%arg0: i32) -> (i32, i32) {
    %c0_i32 = arith.constant 0 : i32
    %c0_i32_0 = arith.constant 0 : i32
    %c0_i32_1 = arith.constant 0 : i32
    return %c0_i32, %c0_i32_0 : i32, i32
  }
  func.func @transform_2(%arg0: i32) -> (i32, i32) {
    %c0_i32 = arith.constant 0 : i32
    %c0_i32_0 = arith.constant 0 : i32
    %c0_i32_1 = arith.constant 0 : i32
    return %c0_i32, %c0_i32_0 : i32, i32
  }
  func.func @transform_3(%arg0: i32) -> (i32, i32) {
    %c0_i32 = arith.constant 0 : i32
    %c0_i32_0 = arith.constant 0 : i32
    return %arg0, %c0_i32 : i32, i32
  }
}

</mosaic_0001>

<llo_original>
// kernel: tpu_custom_call.1
$region0: #{tpu_custom_call.1}
  #allocation0 [shape = 'u32[]', space=smem, size = 0x4, offset = 0x4, fixed_abs, tag = 'smem constant byte address 0x4 - core index']
  #allocation1 [shape = 'u32[144,128]{1,0:T(1,128)}', space=vmem, size = 0x12000, scoped, tag = 'internal scratch']
  %s0 = inlined_call_operand.hbm [shape: f32[16,256], index: 0, kind: input, shape index: {}]
  %s1 = inlined_call_operand.hbm [shape: bf16[256,128], index: 1, kind: input, shape index: {}]
  %s2 = inlined_call_operand.vmem [shape: f32[1,128], index: 2, kind: input, shape index: {}]
  %s3 = inlined_call_operand.hbm [shape: f32[16,128], index: 3, kind: output, shape index: {}]
  %s4 = sld [smem:[#allocation0]]
  $region30: #{tpu_custom_call.1} parent=0
    _
  %s6 = ssub.s32 1, %s4
  %s7 = scalar_select 0, %s6, %s4
  $region1: #{tpu_custom_call.1} parent=0
    #allocation2 [shape = 'u8[16384]{0}', space=vmem, size = 0x4000, scoped, tag = 'input window, operand 0, single buffered']
    #allocation3 [shape = 's32[1]{0}', space=sflag, size = 0x4, scoped, tag = 'scoped memory for tpu_custom_call.1']
    #allocation4 [shape = 's32[1]{0}', space=sflag, size = 0x4, scoped, tag = 'scoped memory for tpu_custom_call.1']
    #allocation5 [shape = 'u8[65536]{0}', space=vmem, size = 0x10000, scoped, tag = 'input window, operand 1, single buffered']
    #allocation6 [shape = 's32[1]{0}', space=sflag, size = 0x4, scoped, tag = 'scoped memory for tpu_custom_call.1']
    #allocation7 [shape = 'u8[8192]{0}', space=vmem, size = 0x2000, scoped, tag = 'output window, operand 0, single buffered']
    %8 = vsyncpa [#allocation3], 0
    %9 = vsyncpa [#allocation6], 0
    %10 = vsyncpa [#allocation4], 0
    // Predicated region
    $region2: #{tpu_custom_call.1} parent=1 // pred_check
      _
    $region3: #{tpu_custom_call.1} parent=1 // pred_check_branch
      %12 = sbr.rel (0) target = $region5
    $region4: #{tpu_custom_call.1} parent=1 // pred_region
      %s14 = ssub.s32 512, 512
      %15 = vsyncadd [#allocation3], %s14
      %s16 = sshll.u32 [#allocation2], 4
      %s17 = int_to_ptr.vmem [resolvable:$true] %s16
      %22 = dma.hbm_to_vmem [thread:$0]  %s0, 512, %s17, [#allocation3], 256, 256, 16
    $region5: #{tpu_custom_call.1} parent=1 // pred_fallthru
      _
    // Predicated region
    $region6: #{tpu_custom_call.1} parent=1 // pred_check
      _
    $region7: #{tpu_custom_call.1} parent=1 // pred_check_branch
      %24 = sbr.rel (0) target = $region9
    $region8: #{tpu_custom_call.1} parent=1 // pred_region
      %s26 = ssub.s32 2048, 2048
      %27 = vsyncadd [#allocation6], %s26
      %s28 = sshll.u32 [#allocation5], 4
      %s29 = int_to_ptr.vmem [resolvable:$true] %s28
      %34 = dma.hbm_to_vmem [thread:$0]  %s1, 2048, %s29, [#allocation6], 64, 64, 4
    $region9: #{tpu_custom_call.1} parent=1 // pred_fallthru
      _
    // Predicated region
    $region10: #{tpu_custom_call.1} parent=1 // pred_check
      _
    $region11: #{tpu_custom_call.1} parent=1 // pred_check_branch
      %36 = sbr.rel (0) target = $region13
    $region12: #{tpu_custom_call.1} parent=1 // pred_region
      _
    $region13: #{tpu_custom_call.1} parent=1 // pred_fallthru
      _
    // Predicated region
    $region14: #{tpu_custom_call.1} parent=1 // pred_check
      _
    $region15: #{tpu_custom_call.1} parent=1 // pred_check_branch
      %38 = sbr.rel (0) target = $region17
    $region16: #{tpu_custom_call.1} parent=1 // pred_region
      %39 = dma.done [#allocation3], 512
    $region17: #{tpu_custom_call.1} parent=1 // pred_fallthru
      _
    // Predicated region
    $region18: #{tpu_custom_call.1} parent=1 // pred_check
      _
    $region19: #{tpu_custom_call.1} parent=1 // pred_check_branch
      %41 = sbr.rel (0) target = $region21
    $region20: #{tpu_custom_call.1} parent=1 // pred_region
      %42 = dma.done [#allocation6], 2048
    $region21: #{tpu_custom_call.1} parent=1 // pred_fallthru
      _
    %v44 = vld [vmem:[#allocation5] sm:$0xf]
    %v45 = vld [vmem:[#allocation5 + $0x4] sm:$0xf]
    %v46 = vld [vmem:[#allocation5 + $0x8] sm:$0xf]
    %v47 = vld [vmem:[#allocation5 + $0xc] sm:$0xf]
    %v48 = vld [vmem:[#allocation5 + $0x10] sm:$0xf]
    %v49 = vld [vmem:[#allocation5 + $0x14] sm:$0xf]
    %v50 = vld [vmem:[#allocation5 + $0x18] sm:$0xf]
    %v51 = vld [vmem:[#allocation5 + $0x1c] sm:$0xf]
    %v52 = vld [vmem:[#allocation5 + $0x20] sm:$0xf]
    %v53 = vld [vmem:[#allocation5 + $0x24] sm:$0xf]
    %v54 = vld [vmem:[#allocation5 + $0x28] sm:$0xf]
    %v55 = vld [vmem:[#allocation5 + $0x2c] sm:$0xf]
    %v56 = vld [vmem:[#allocation5 + $0x30] sm:$0xf]
    %v57 = vld [vmem:[#allocation5 + $0x34] sm:$0xf]
    %v58 = vld [vmem:[#allocation5 + $0x38] sm:$0xf]
    %v59 = vld [vmem:[#allocation5 + $0x3c] sm:$0xf]
    %v60 = vld [vmem:[#allocation5 + $0x40] sm:$0xf]
    %v61 = vld [vmem:[#allocation5 + $0x44] sm:$0xf]
    %v62 = vld [vmem:[#allocation5 + $0x48] sm:$0xf]
    %v63 = vld [vmem:[#allocation5 + $0x4c] sm:$0xf]
    %v64 = vld [vmem:[#allocation5 + $0x50] sm:$0xf]
    %v65 = vld [vmem:[#allocation5 + $0x54] sm:$0xf]
    %v66 = vld [vmem:[#allocation5 + $0x58] sm:$0xf]
    %v67 = vld [vmem:[#allocation5 + $0x5c] sm:$0xf]
    %v68 = vld [vmem:[#allocation5 + $0x60] sm:$0xf]
    %v69 = vld [vmem:[#allocation5 + $0x64] sm:$0xf]
    %v70 = vld [vmem:[#allocation5 + $0x68] sm:$0xf]
    %v71 = vld [vmem:[#allocation5 + $0x6c] sm:$0xf]
    %v72 = vld [vmem:[#allocation5 + $0x70] sm:$0xf]
    %v73 = vld [vmem:[#allocation5 + $0x74] sm:$0xf]
    %v74 = vld [vmem:[#allocation5 + $0x78] sm:$0xf]
    %v75 = vld [vmem:[#allocation5 + $0x7c] sm:$0xf]
    %v76 = vld [vmem:[#allocation2] sm:$0xff]
    %v77 = vld [vmem:[#allocation2 + $0x8] sm:$0xff]
    %v78 = vld [vmem:[#allocation2 + $0x10] sm:$0xff]
    %v79 = vld [vmem:[#allocation2 + $0x18] sm:$0xff]
    %v80 = vpack.c.bf16 %v78, %v76
    %v81 = vpack.c.bf16 %v79, %v77
    %v82 = vld [vmem:[%s2] sm:$0x1]
    %v84 = vlaneseq
    %v85 = vshrl.u32 %v84, 7
    %v86 = vsub.s32 0, %v85
    %v87 = vrot.slane %v82, %v86
    %v121 = vunpack.c.l.b16 %v44
    %v122 = vunpack.c.l.b16 %v45
    %v123 = vunpack.c.l.b16 %v46
    %v124 = vunpack.c.l.b16 %v47
    %v125 = vunpack.c.l.b16 %v48
    %v126 = vunpack.c.l.b16 %v49
    %v127 = vunpack.c.l.b16 %v50
    %v128 = vunpack.c.l.b16 %v51
    %v129 = vunpack.c.l.b16 %v52
    %v130 = vunpack.c.l.b16 %v53
    %v131 = vunpack.c.l.b16 %v54
    %v132 = vunpack.c.l.b16 %v55
    %v133 = vunpack.c.l.b16 %v56
    %v134 = vunpack.c.l.b16 %v57
    %v135 = vunpack.c.l.b16 %v58
    %v136 = vunpack.c.l.b16 %v59
    %v137 = vunpack.c.l.b16 %v60
    %v138 = vunpack.c.l.b16 %v61
    %v139 = vunpack.c.l.b16 %v62
    %v140 = vunpack.c.l.b16 %v63
    %v141 = vunpack.c.l.b16 %v64
    %v142 = vunpack.c.l.b16 %v65
    %v143 = vunpack.c.l.b16 %v66
    %v144 = vunpack.c.l.b16 %v67
    %v145 = vunpack.c.l.b16 %v68
    %v146 = vunpack.c.l.b16 %v69
    %v147 = vunpack.c.l.b16 %v70
    %v148 = vunpack.c.l.b16 %v71
    %v149 = vunpack.c.l.b16 %v72
    %v150 = vunpack.c.l.b16 %v73
    %v151 = vunpack.c.l.b16 %v74
    %v152 = vunpack.c.l.b16 %v75
    %v153 = vpack.c.b16 %v122, %v121
    %v154 = vpack.c.b16 %v124, %v123
    %v155 = vpack.c.b16 %v126, %v125
    %v156 = vpack.c.b16 %v128, %v127
    %v157 = vpack.c.b16 %v130, %v129
    %v158 = vpack.c.b16 %v132, %v131
    %v159 = vpack.c.b16 %v134, %v133
    %v160 = vpack.c.b16 %v136, %v135
    %v161 = vpack.c.b16 %v138, %v137
    %v162 = vpack.c.b16 %v140, %v139
    %v163 = vpack.c.b16 %v142, %v141
    %v164 = vpack.c.b16 %v144, %v143
    %v165 = vpack.c.b16 %v146, %v145
    %v166 = vpack.c.b16 %v148, %v147
    %v167 = vpack.c.b16 %v150, %v149
    %v168 = vpack.c.b16 %v152, %v151
    %185 = vmatprep.subr.bf16.mxu0 0
    %186 = vmatpush1.bf16.msra.mxu0 %v160
    %187 = vmatprep.subr.bf16.mxu0 0
    %188 = vmatpush1.bf16.msra.mxu0 %v159
    %189 = vmatprep.subr.bf16.mxu0 0
    %190 = vmatpush1.bf16.msra.mxu0 %v158
    %191 = vmatprep.subr.bf16.mxu0 0
    %192 = vmatpush1.bf16.msra.mxu0 %v157
    %193 = vmatprep.subr.bf16.mxu0 0
    %194 = vmatpush1.bf16.msra.mxu0 %v156
    %195 = vmatprep.subr.bf16.mxu0 0
    %196 = vmatpush1.bf16.msra.mxu0 %v155
    %197 = vmatprep.subr.bf16.mxu0 0
    %198 = vmatpush1.bf16.msra.mxu0 %v154
    %199 = vmatprep.subr.bf16.mxu0 0
    %200 = vmatpush1.bf16.msra.mxu0 %v153
    %201 = vmatprep.subr.bf16.mxu0 0
    %202 = vmatpush2.bf16.msra.mxu0 %v168
    %203 = vmatprep.subr.bf16.mxu0 0
    %204 = vmatpush2.bf16.msra.mxu0 %v167
    %205 = vmatprep.subr.bf16.mxu0 0
    %206 = vmatpush2.bf16.msra.mxu0 %v166
    %207 = vmatprep.subr.bf16.mxu0 0
    %208 = vmatpush2.bf16.msra.mxu0 %v165
    %209 = vmatprep.subr.bf16.mxu0 0
    %210 = vmatpush2.bf16.msra.mxu0 %v164
    %211 = vmatprep.subr.bf16.mxu0 0
    %212 = vmatpush2.bf16.msra.mxu0 %v163
    %213 = vmatprep.subr.bf16.mxu0 0
    %214 = vmatpush2.bf16.msra.mxu0 %v162
    %215 = vmatprep.subr.bf16.mxu0 0
    %216 = vmatpush2.bf16.msra.mxu0 %v161
    %217 = vmatprep.mubr.bf16.mxu0 %v81
    %218 = vmatmul.mubr.bf16.gmra.mxu0 %v80
    %v219 = vpop.f32.mrf.mxu0
    %v220 = vadd.f32 %v87, %v219
    %v221 = vpop.f32.mrf.mxu0
    %v222 = vpop.f32.mrf.mxu0
    %v223 = vadd.f32 %v87, %v222
    %v224 = vpop.f32.mrf.mxu0
    %225 = vdwg.mxu0
    %v226 = vmul.f32 %v220, %v220
    %v227 = vmul.f32 %v223, %v223
    %228 = vadd.xlane.f32.xlu0 %v226
    %v229 = vpop.xlane.xlu0 %228
    %230 = vadd.xlane.f32.xlu0 %v227
    %v231 = vpop.xlane.xlu0 %230
    %v232 = vadd.f32 %v229, 1e-12
    %v233 = vadd.f32 %v231, 1e-12
    %v234 = vrsqrt.pop %v232
    %v235 = vrsqrt.pop %v233
    %v236 = vmul.f32 %v220, %v234
    %v237 = vmul.f32 %v223, %v235
    %238 = vst [vmem:[#allocation7] sm:$0xff] %v236
    %239 = vst [vmem:[#allocation7 + $0x8] sm:$0xff] %v237
    // Predicated region
    $region22: #{tpu_custom_call.1} parent=1 // pred_check
      _
    $region23: #{tpu_custom_call.1} parent=1 // pred_check_branch
      %241 = sbr.rel (0) target = $region25
    $region24: #{tpu_custom_call.1} parent=1 // pred_region
      %s243 = ssub.s32 256, 256
      %244 = vsyncadd [#allocation4], %s243
      %s245 = sshll.u32 [#allocation7], 4
      %s246 = int_to_ptr.vmem [resolvable:$true] %s245
      %251 = dma.vmem_to_hbm [thread:$0]  %s246, 256, %s3, [#allocation4], 128, 128, 8
    $region25: #{tpu_custom_call.1} parent=1 // pred_fallthru
      _
    // Predicated region
    $region26: #{tpu_custom_call.1} parent=1 // pred_check
      _
    $region27: #{tpu_custom_call.1} parent=1 // pred_check_branch
      %253 = sbr.rel (0) target = $region29
    $region28: #{tpu_custom_call.1} parent=1 // pred_region
      %254 = dma.done [#allocation4], 256
    $region29: #{tpu_custom_call.1} parent=1 // pred_fallthru
      _
    %255 = vsyncpa [#allocation3], 1
    %256 = vsyncpa [#allocation6], 1
    %257 = vsyncpa [#allocation4], 1

// kernel: tpu_custom_call.1
$region0: #{tpu_custom_call.1}
  #allocation0 [shape = 'u32[]', space=smem, size = 0x4, offset = 0x4, fixed_abs, tag = 'smem constant byte address 0x4 - core index']
  #allocation1 [shape = 'u32[144,128]{1,0:T(1,128)}', space=vmem, size = 0x12000, scoped, tag = 'internal scratch']
  %s0 = inlined_call_operand.hbm [shape: f32[16,256], index: 0, kind: input, shape index: {}]
  %s1 = inlined_call_operand.hbm [shape: bf16[256,128], index: 1, kind: input, shape index: {}]
  %s2 = inlined_call_operand.vmem [shape: f32[1,128], index: 2, kind: input, shape index: {}]
  %s3 = inlined_call_operand.hbm [shape: f32[16,128], index: 3, kind: output, shape index: {}]
  %s4 = sld [smem:[#allocation0]]
  $region30: #{tpu_custom_call.1} parent=0
    _
  %s6 = ssub.s32 1, %s4
  %s7 = scalar_select 0, %s6, %s4
  $region1: #{tpu_custom_call.1} parent=0
    #allocation2 [shape = 'u8[16384]{0}', space=vmem, size = 0x4000, scoped, tag = 'input window, operand 0, single buffered']
    #allocation3 [shape = 's32[1]{0}', space=sflag, size = 0x4, scoped, tag = 'scoped memory for tpu_custom_call.1']
    #allocation4 [shape = 's32[1]{0}', space=sflag, size = 0x4, scoped, tag = 'scoped memory for tpu_custom_call.1']
    #allocation5 [shape = 'u8[65536]{0}', space=vmem, size = 0x10000, scoped, tag = 'input window, operand 1, single buffered']
    #allocation6 [shape = 's32[1]{0}', space=sflag, size = 0x4, scoped, tag = 'scoped memory for tpu_custom_call.1']
    #allocation7 [shape = 'u8[8192]{0}', space=vmem, size = 0x2000, scoped, tag = 'output window, operand 0, single buffered']
    %8 = vsyncpa [#allocation3], 0
    %9 = vsyncpa [#allocation6], 0
    %10 = vsyncpa [#allocation4], 0
    // Predicated region
    $region2: #{tpu_custom_call.1} parent=1 // pred_check
      _
    $region3: #{tpu_custom_call.1} parent=1 // pred_check_branch
      %12 = sbr.rel (0) target = $region5
    $region4: #{tpu_custom_call.1} parent=1 // pred_region
      %s14 = ssub.s32 512, 512
      %15 = vsyncadd [#allocation3], %s14
      %s16 = sshll.u32 [#allocation2], 4
      %s17 = int_to_ptr.vmem [resolvable:$true] %s16
      %22 = dma.hbm_to_vmem [thread:$0]  %s0, 512, %s17, [#allocation3], 256, 256, 16
    $region5: #{tpu_custom_call.1} parent=1 // pred_fallthru
      _
    // Predicated region
    $region6: #{tpu_custom_call.1} parent=1 // pred_check
      _
    $region7: #{tpu_custom_call.1} parent=1 // pred_check_branch
      %24 = sbr.rel (0) target = $region9
    $region8: #{tpu_custom_call.1} parent=1 // pred_region
      %s26 = ssub.s32 2048, 2048
      %27 = vsyncadd [#allocation6], %s26
      %s28 = sshll.u32 [#allocation5], 4
      %s29 = int_to_ptr.vmem [resolvable:$true] %s28
      %34 = dma.hbm_to_vmem [thread:$0]  %s1, 2048, %s29, [#allocation6], 64, 64, 4
    $region9: #{tpu_custom_call.1} parent=1 // pred_fallthru
      _
    // Predicated region
    $region10: #{tpu_custom_call.1} parent=1 // pred_check
      _
    $region11: #{tpu_custom_call.1} parent=1 // pred_check_branch
      %36 = sbr.rel (0) target = $region13
    $region12: #{tpu_custom_call.1} parent=1 // pred_region
      _
    $region13: #{tpu_custom_call.1} parent=1 // pred_fallthru
      _
    // Predicated region
    $region14: #{tpu_custom_call.1} parent=1 // pred_check
      _
    $region15: #{tpu_custom_call.1} parent=1 // pred_check_branch
      %38 = sbr.rel (0) target = $region17
    $region16: #{tpu_custom_call.1} parent=1 // pred_region
      %39 = dma.done [#allocation3], 512
    $region17: #{tpu_custom_call.1} parent=1 // pred_fallthru
      _
    // Predicated region
    $region18: #{tpu_custom_call.1} parent=1 // pred_check
      _
    $region19: #{tpu_custom_call.1} parent=1 // pred_check_branch
      %41 = sbr.rel (0) target = $region21
    $region20: #{tpu_custom_call.1} parent=1 // pred_region
      %42 = dma.done [#allocation6], 2048
    $region21: #{tpu_custom_call.1} parent=1 // pred_fallthru
      _
    %v44 = vld [vmem:[#allocation5] sm:$0xf]
    %v45 = vld [vmem:[#allocation5 + $0x4] sm:$0xf]
    %v46 = vld [vmem:[#allocation5 + $0x8] sm:$0xf]
    %v47 = vld [vmem:[#allocation5 + $0xc] sm:$0xf]
    %v48 = vld [vmem:[#allocation5 + $0x10] sm:$0xf]
    %v49 = vld [vmem:[#allocation5 + $0x14] sm:$0xf]
    %v50 = vld [vmem:[#allocation5 + $0x18] sm:$0xf]
    %v51 = vld [vmem:[#allocation5 + $0x1c] sm:$0xf]
    %v52 = vld [vmem:[#allocation5 + $0x20] sm:$0xf]
    %v53 = vld [vmem:[#allocation5 + $0x24] sm:$0xf]
    %v54 = vld [vmem:[#allocation5 + $0x28] sm:$0xf]
    %v55 = vld [vmem:[#allocation5 + $0x2c] sm:$0xf]
    %v56 = vld [vmem:[#allocation5 + $0x30] sm:$0xf]
    %v57 = vld [vmem:[#allocation5 + $0x34] sm:$0xf]
    %v58 = vld [vmem:[#allocation5 + $0x38] sm:$0xf]
    %v59 = vld [vmem:[#allocation5 + $0x3c] sm:$0xf]
    %v60 = vld [vmem:[#allocation5 + $0x40] sm:$0xf]
    %v61 = vld [vmem:[#allocation5 + $0x44] sm:$0xf]
    %v62 = vld [vmem:[#allocation5 + $0x48] sm:$0xf]
    %v63 = vld [vmem:[#allocation5 + $0x4c] sm:$0xf]
    %v64 = vld [vmem:[#allocation5 + $0x50] sm:$0xf]
    %v65 = vld [vmem:[#allocation5 + $0x54] sm:$0xf]
    %v66 = vld [vmem:[#allocation5 + $0x58] sm:$0xf]
    %v67 = vld [vmem:[#allocation5 + $0x5c] sm:$0xf]
    %v68 = vld [vmem:[#allocation5 + $0x60] sm:$0xf]
    %v69 = vld [vmem:[#allocation5 + $0x64] sm:$0xf]
    %v70 = vld [vmem:[#allocation5 + $0x68] sm:$0xf]
    %v71 = vld [vmem:[#allocation5 + $0x6c] sm:$0xf]
    %v72 = vld [vmem:[#allocation5 + $0x70] sm:$0xf]
    %v73 = vld [vmem:[#allocation5 + $0x74] sm:$0xf]
    %v74 = vld [vmem:[#allocation5 + $0x78] sm:$0xf]
    %v75 = vld [vmem:[#allocation5 + $0x7c] sm:$0xf]
    %v76 = vld [vmem:[#allocation2] sm:$0xff]
    %v77 = vld [vmem:[#allocation2 + $0x8] sm:$0xff]
    %v78 = vld [vmem:[#allocation2 + $0x10] sm:$0xff]
    %v79 = vld [vmem:[#allocation2 + $0x18] sm:$0xff]
    %v80 = vpack.c.bf16 %v78, %v76
    %v81 = vpack.c.bf16 %v79, %v77
    %v82 = vld [vmem:[%s2] sm:$0x1]
    %v84 = vlaneseq
    %v85 = vshrl.u32 %v84, 7
    %v86 = vsub.s32 0, %v85
    %v87 = vrot.slane %v82, %v86
    %v121 = vunpack.c.l.b16 %v44
    %v122 = vunpack.c.l.b16 %v45
    %v123 = vunpack.c.l.b16 %v46
    %v124 = vunpack.c.l.b16 %v47
    %v125 = vunpack.c.l.b16 %v48
    %v126 = vunpack.c.l.b16 %v49
    %v127 = vunpack.c.l.b16 %v50
    %v128 = vunpack.c.l.b16 %v51
    %v129 = vunpack.c.l.b16 %v52
    %v130 = vunpack.c.l.b16 %v53
    %v131 = vunpack.c.l.b16 %v54
    %v132 = vunpack.c.l.b16 %v55
    %v133 = vunpack.c.l.b16 %v56
    %v134 = vunpack.c.l.b16 %v57
    %v135 = vunpack.c.l.b16 %v58
    %v136 = vunpack.c.l.b16 %v59
    %v137 = vunpack.c.l.b16 %v60
    %v138 = vunpack.c.l.b16 %v61
    %v139 = vunpack.c.l.b16 %v62
    %v140 = vunpack.c.l.b16 %v63
    %v141 = vunpack.c.l.b16 %v64
    %v142 = vunpack.c.l.b16 %v65
    %v143 = vunpack.c.l.b16 %v66
    %v144 = vunpack.c.l.b16 %v67
    %v145 = vunpack.c.l.b16 %v68
    %v146 = vunpack.c.l.b16 %v69
    %v147 = vunpack.c.l.b16 %v70
    %v148 = vunpack.c.l.b16 %v71
    %v149 = vunpack.c.l.b16 %v72
    %v150 = vunpack.c.l.b16 %v73
    %v151 = vunpack.c.l.b16 %v74
    %v152 = vunpack.c.l.b16 %v75
    %v153 = vpack.c.b16 %v122, %v121
    %v154 = vpack.c.b16 %v124, %v123
    %v155 = vpack.c.b16 %v126, %v125
    %v156 = vpack.c.b16 %v128, %v127
    %v157 = vpack.c.b16 %v130, %v129
    %v158 = vpack.c.b16 %v132, %v131
    %v159 = vpack.c.b16 %v134, %v133
    %v160 = vpack.c.b16 %v136, %v135
    %v161 = vpack.c.b16 %v138, %v137
    %v162 = vpack.c.b16 %v140, %v139
    %v163 = vpack.c.b16 %v142, %v141
    %v164 = vpack.c.b16 %v144, %v143
    %v165 = vpack.c.b16 %v146, %v145
    %v166 = vpack.c.b16 %v148, %v147
    %v167 = vpack.c.b16 %v150, %v149
    %v168 = vpack.c.b16 %v152, %v151
    %185 = vmatprep.subr.bf16.mxu0 0
    %186 = vmatpush1.bf16.msra.mxu0 %v160
    %187 = vmatprep.subr.bf16.mxu0 0
    %188 = vmatpush1.bf16.msra.mxu0 %v159
    %189 = vmatprep.subr.bf16.mxu0 0
    %190 = vmatpush1.bf16.msra.mxu0 %v158
    %191 = vmatprep.subr.bf16.mxu0 0
    %192 = vmatpush1.bf16.msra.mxu0 %v157
    %193 = vmatprep.subr.bf16.mxu0 0
    %194 = vmatpush1.bf16.msra.mxu0 %v156
    %195 = vmatprep.subr.bf16.mxu0 0
    %196 = vmatpush1.bf16.msra.mxu0 %v155
    %197 = vmatprep.subr.bf16.mxu0 0
    %198 = vmatpush1.bf16.msra.mxu0 %v154
    %199 = vmatprep.subr.bf16.mxu0 0
    %200 = vmatpush1.bf16.msra.mxu0 %v153
    %201 = vmatprep.subr.bf16.mxu0 0
    %202 = vmatpush2.bf16.msra.mxu0 %v168
    %203 = vmatprep.subr.bf16.mxu0 0
    %204 = vmatpush2.bf16.msra.mxu0 %v167
    %205 = vmatprep.subr.bf16.mxu0 0
    %206 = vmatpush2.bf16.msra.mxu0 %v166
    %207 = vmatprep.subr.bf16.mxu0 0
    %208 = vmatpush2.bf16.msra.mxu0 %v165
    %209 = vmatprep.subr.bf16.mxu0 0
    %210 = vmatpush2.bf16.msra.mxu0 %v164
    %211 = vmatprep.subr.bf16.mxu0 0
    %212 = vmatpush2.bf16.msra.mxu0 %v163
    %213 = vmatprep.subr.bf16.mxu0 0
    %214 = vmatpush2.bf16.msra.mxu0 %v162
    %215 = vmatprep.subr.bf16.mxu0 0
    %216 = vmatpush2.bf16.msra.mxu0 %v161
    %217 = vmatprep.mubr.bf16.mxu0 %v81
    %218 = vmatmul.mubr.bf16.gmra.mxu0 %v80
    %v219 = vpop.f32.mrf.mxu0
    %v220 = vadd.f32 %v87, %v219
    %v221 = vpop.f32.mrf.mxu0
    %v222 = vpop.f32.mrf.mxu0
    %v223 = vadd.f32 %v87, %v222
    %v224 = vpop.f32.mrf.mxu0
    %225 = vdwg.mxu0
    %v226 = vmul.f32 %v220, %v220
    %v227 = vmul.f32 %v223, %v223
    %228 = vadd.xlane.f32.xlu0 %v226
    %v229 = vpop.xlane.xlu0 %228
    %230 = vadd.xlane.f32.xlu0 %v227
    %v231 = vpop.xlane.xlu0 %230
    %v232 = vadd.f32 %v229, 1e-12
    %v233 = vadd.f32 %v231, 1e-12
    %v234 = vrsqrt.pop %v232
    %v235 = vrsqrt.pop %v233
    %v236 = vmul.f32 %v220, %v234
    %v237 = vmul.f32 %v223, %v235
    %238 = vst [vmem:[#allocation7] sm:$0xff] %v236
    %239 = vst [vmem:[#allocation7 + $0x8] sm:$0xff] %v237
    // Predicated region
    $region22: #{tpu_custom_call.1} parent=1 // pred_check
      _
    $region23: #{tpu_custom_call.1} parent=1 // pred_check_branch
      %241 = sbr.rel (0) target = $region25
    $region24: #{tpu_custom_call.1} parent=1 // pred_region
      %s243 = ssub.s32 256, 256
      %244 = vsyncadd [#allocation4], %s243
      %s245 = sshll.u32 [#allocation7], 4
      %s246 = int_to_ptr.vmem [resolvable:$true] %s245
      %251 = dma.vmem_to_hbm [thread:$0]  %s246, 256, %s3, [#allocation4], 128, 128, 8
    $region25: #{tpu_custom_call.1} parent=1 // pred_fallthru
      _
    // Predicated region
    $region26: #{tpu_custom_call.1} parent=1 // pred_check
      _
    $region27: #{tpu_custom_call.1} parent=1 // pred_check_branch
      %253 = sbr.rel (0) target = $region29
    $region28: #{tpu_custom_call.1} parent=1 // pred_region
      %254 = dma.done [#allocation4], 256
    $region29: #{tpu_custom_call.1} parent=1 // pred_fallthru
      _
    %255 = vsyncpa [#allocation3], 1
    %256 = vsyncpa [#allocation6], 1
    %257 = vsyncpa [#allocation4], 1

</llo_original>
